<compile_context>
chip_gen: v6e
topology: v6e:2x2x1
jax: 0.10.0
libtpu: 0.0.40
codegen_flags: <defaults>
</compile_context>

<pallas_src>
import functools

import jax
import jax.numpy as jnp
from jax.experimental import pallas as pl
from jax.experimental.pallas import tpu as pltpu

LANES = 128
SUBLANES = 8
MAX_BLOCK_ROWS = 2048   # 2048 x 128 x 4B = 1 MiB per f32 input tile
NSPLIT = 2              # leading "parallel" axis -> both TensorCores on v7x


def _cdiv(a, b):
    return -(-a // b)


def _dice_kernel(logits_ref, targets_ref, inter_ref, card_ref, *,
                 n_valid, block_rows, blocks_per_split, needs_mask):
    c = pl.program_id(0)   # parallel split (one per TensorCore on v7x)
    k = pl.program_id(1)   # streaming / reduction axis

    # Output blocks are revisited across k (their index_map is constant in k),
    # so they double as per-split accumulators.  Zero them on the first visit.
    @pl.when(k == 0)
    def _():
        inter_ref[...] = jnp.zeros_like(inter_ref)
        card_ref[...] = jnp.zeros_like(card_ref)

    probs = jax.nn.sigmoid(logits_ref[...].astype(jnp.float32))
    tgt = targets_ref[...].astype(jnp.float32)

    prod = probs * tgt
    summ = probs + tgt

    if needs_mask:
        # Global flat index of every element of this *logical* block; zero out
        # anything at or past the true element count (wrapper padding, partial
        # edge blocks, or fully-out-of-range clamped blocks).
        logical_block = c * blocks_per_split + k
        base = logical_block * (block_rows * LANES)
        row_ids = jax.lax.broadcasted_iota(jnp.int32, (block_rows, LANES), 0)
        lane_ids = jax.lax.broadcasted_iota(jnp.int32, (block_rows, LANES), 1)
        idx = base + row_ids * LANES + lane_ids
        mask = idx < n_valid
        prod = jnp.where(mask, prod, 0.0)
        summ = jnp.where(mask, summ, 0.0)

    # Sublane-group reduction of the (block_rows, 128) tile down to a single
    # (8, 128) vreg tile: pure full-vreg VPU adds, no per-step cross-lane work.
    inter_ref[...] += jnp.sum(prod.reshape(-1, SUBLANES, LANES), axis=0)
    card_ref[...] += jnp.sum(summ.reshape(-1, SUBLANES, LANES), axis=0)


def dice_loss(logits, targets, smooth=1.0):
    """Pallas implementation of DiceLoss.forward (returns a scalar f32)."""
    logits_flat = jnp.ravel(logits)
    targets_flat = jnp.ravel(targets)
    n = logits_flat.shape[0]

    # Pad only up to one (8, 128) vreg tile so the data can be viewed as a
    # lane-dense (rows, 128) slab with rows % 8 == 0.  For typical
    # segmentation shapes this is a static no-op; correctness of any padded /
    # out-of-range elements is handled by the in-kernel mask, so the pad
    # values themselves are irrelevant.
    chunk = SUBLANES * LANES
    n_pad = (-n) % chunk
    if n_pad:
        logits_flat = jnp.pad(logits_flat, (0, n_pad))
        targets_flat = jnp.pad(targets_flat, (0, n_pad))
    rows = (n + n_pad) // LANES

    block_rows = min(MAX_BLOCK_ROWS, rows)          # multiple of 8
    nblocks = _cdiv(rows, block_rows)
    nsplit = min(NSPLIT, nblocks)
    blocks_per_split = _cdiv(nblocks, nsplit)
    coverage = nsplit * blocks_per_split * block_rows * LANES
    needs_mask = coverage != n

    logits_2d = logits_flat.reshape(rows, LANES)
    targets_2d = targets_flat.reshape(rows, LANES)

    def in_map(c, k):
        # Clamp so a logically out-of-range tail block re-reads a valid block;
        # its contribution is zeroed by the in-kernel mask.
        return (jnp.minimum(c * blocks_per_split + k, nblocks - 1), 0)

    kernel = functools.partial(
        _dice_kernel,
        n_valid=n,
        block_rows=block_rows,
        blocks_per_split=blocks_per_split,
        needs_mask=needs_mask,
    )

    inter_parts, card_parts = pl.pallas_call(
        kernel,
        out_shape=(
            jax.ShapeDtypeStruct((nsplit, SUBLANES, LANES), jnp.float32),
            jax.ShapeDtypeStruct((nsplit, SUBLANES, LANES), jnp.float32),
        ),
        grid_spec=pltpu.PrefetchScalarGridSpec(
            num_scalar_prefetch=0,
            grid=(nsplit, blocks_per_split),
            in_specs=[
                pl.BlockSpec((block_rows, LANES), in_map),
                pl.BlockSpec((block_rows, LANES), in_map),
            ],
            out_specs=(
                pl.BlockSpec((None, SUBLANES, LANES), lambda c, k: (c, 0, 0)),
                pl.BlockSpec((None, SUBLANES, LANES), lambda c, k: (c, 0, 0)),
            ),
        ),
        compiler_params=pltpu.CompilerParams(
            dimension_semantics=("parallel", "arbitrary")),
    )(logits_2d, targets_2d)

    # Tiny final reduction + dice math on (nsplit, 8, 128) partials.
    intersection = jnp.sum(inter_parts)
    cardinality = jnp.sum(card_parts)
    dice = (2.0 * intersection + smooth) / (cardinality + smooth)
    return 1.0 - dice


def _reference(logits, targets, smooth=1.0):
    probs = jax.nn.sigmoid(logits.astype(jnp.float32)).reshape(-1)
    tgt = targets.astype(jnp.float32).reshape(-1)
    inter = jnp.sum(probs * tgt)
    card = jnp.sum(probs + tgt)
    return 1.0 - (2.0 * inter + smooth) / (card + smooth)


if __name__ == "__main__":
    key = jax.random.PRNGKey(0)

    shapes = [
        (2, 4, 16, 16),     # primary small NCHW test: exact tile cover
        (2, 3, 37, 41),     # ragged size -> exercises the in-kernel mask path
        (2, 4, 256, 256),   # >1 block -> exercises the 2-way "parallel" split
    ]
    for shape in shapes:
        key, k1, k2 = jax.random.split(key, 3)
        logits = jax.random.normal(k1, shape, dtype=jnp.float32)
        targets = (jax.random.uniform(k2, shape) > 0.5).astype(jnp.float32)

        loss = jax.block_until_ready(dice_loss(logits, targets, smooth=1.0))
        ref = _reference(logits, targets, smooth=1.0)
        assert jnp.allclose(loss, ref, atol=1e-4, rtol=1e-4), (shape, loss, ref)

    print("KERNEL_OK")
</pallas_src>

<mosaic_0001>
module attributes {stable_mosaic.version = 11 : i64} {
  func.func @_dice_kernel(%arg0: i32, %arg1: i32, %arg2: memref<16x128xf32, #tpu.memory_space<vmem>>, %arg3: memref<16x128xf32, #tpu.memory_space<vmem>>, %arg4: memref<1x8x128xf32, #tpu.memory_space<vmem>>, %arg5: memref<1x8x128xf32, #tpu.memory_space<vmem>>) attributes {dimension_semantics = [#tpu.dimension_semantics<parallel>, #tpu.dimension_semantics<arbitrary>], iteration_bounds = array<i64: 1, 1>, scalar_prefetch = 0 : i64, scratch_operands = 0 : i64, tpu.core_type = #tpu.core_type<tc>, window_params = [{transform_indices = @transform_0, window_bounds = array<i64: 16, 128>}, {transform_indices = @transform_1, window_bounds = array<i64: 16, 128>}, {transform_indices = @transform_2, window_bounds = array<i64: 1, 8, 128>}, {transform_indices = @transform_3, window_bounds = array<i64: 1, 8, 128>}]} {
    %c0_i32 = arith.constant 0 : i32
    %0 = arith.cmpi eq, %arg1, %c0_i32 : i32
    %1 = arith.extui %0 : i1 to i32
    %c0_i32_0 = arith.constant 0 : i32
    %2 = arith.cmpi ne, %1, %c0_i32_0 : i32
    scf.if %2 {
      %cst_18 = arith.constant 0.000000e+00 : f32
      %28 = vector.broadcast %cst_18 : f32 to vector<8x128xf32>
      %c0_19 = arith.constant 0 : index
      %c0_20 = arith.constant 0 : index
      %c0_21 = arith.constant 0 : index
      %29 = vector.load %arg4[%c0_19, %c0_20, %c0_21] : memref<1x8x128xf32, #tpu.memory_space<vmem>>, vector<1x8x128xf32>
      %30 = vector.shape_cast %29 : vector<1x8x128xf32> to vector<8x128xf32>
      %31 = vector.shape_cast %28 : vector<8x128xf32> to vector<1x8x128xf32>
      tpu.vector_store %arg4[%c0_19, %c0_20, %c0_21], %31 {strides = array<i32>} : memref<1x8x128xf32, #tpu.memory_space<vmem>>, vector<1x8x128xf32>,
      %cst_22 = arith.constant 0.000000e+00 : f32
      %32 = vector.broadcast %cst_22 : f32 to vector<8x128xf32>
      %c0_23 = arith.constant 0 : index
      %c0_24 = arith.constant 0 : index
      %c0_25 = arith.constant 0 : index
      %33 = vector.load %arg5[%c0_23, %c0_24, %c0_25] : memref<1x8x128xf32, #tpu.memory_space<vmem>>, vector<1x8x128xf32>
      %34 = vector.shape_cast %33 : vector<1x8x128xf32> to vector<8x128xf32>
      %35 = vector.shape_cast %32 : vector<8x128xf32> to vector<1x8x128xf32>
      tpu.vector_store %arg5[%c0_23, %c0_24, %c0_25], %35 {strides = array<i32>} : memref<1x8x128xf32, #tpu.memory_space<vmem>>, vector<1x8x128xf32>,
    } else {
    }
    %c0 = arith.constant 0 : index
    %c0_1 = arith.constant 0 : index
    %3 = vector.load %arg2[%c0, %c0_1] : memref<16x128xf32, #tpu.memory_space<vmem>>, vector<16x128xf32>
    %4 = arith.negf %3 : vector<16x128xf32>
    %5 = math.exp %4 : vector<16x128xf32>
    %cst = arith.constant 1.000000e+00 : f32
    %6 = vector.broadcast %cst : f32 to vector<16x128xf32>
    %7 = arith.addf %6, %5 : vector<16x128xf32>
    %8 = arith.divf %6, %7 : vector<16x128xf32>
    %c0_2 = arith.constant 0 : index
    %c0_3 = arith.constant 0 : index
    %9 = vector.load %arg3[%c0_2, %c0_3] : memref<16x128xf32, #tpu.memory_space<vmem>>, vector<16x128xf32>
    %10 = arith.mulf %8, %9 : vector<16x128xf32>
    %11 = arith.addf %8, %9 : vector<16x128xf32>
    %c0_4 = arith.constant 0 : index
    %c0_5 = arith.constant 0 : index
    %c0_6 = arith.constant 0 : index
    %12 = vector.load %arg4[%c0_4, %c0_5, %c0_6] : memref<1x8x128xf32, #tpu.memory_space<vmem>>, vector<1x8x128xf32>
    %13 = vector.shape_cast %12 : vector<1x8x128xf32> to vector<8x128xf32>
    %14 = vector.shape_cast %10 : vector<16x128xf32> to vector<2x8x128xf32>
    %cst_7 = arith.constant dense<0.000000e+00> : vector<8x128xf32>
    %15 = vector.multi_reduction <add>, %14, %cst_7 [0] : vector<2x8x128xf32> to vector<8x128xf32>
    %16 = arith.addf %13, %15 : vector<8x128xf32>
    %c0_8 = arith.constant 0 : index
    %c0_9 = arith.constant 0 : index
    %c0_10 = arith.constant 0 : index
    %17 = vector.load %arg4[%c0_8, %c0_9, %c0_10] : memref<1x8x128xf32, #tpu.memory_space<vmem>>, vector<1x8x128xf32>
    %18 = vector.shape_cast %17 : vector<1x8x128xf32> to vector<8x128xf32>
    %19 = vector.shape_cast %16 : vector<8x128xf32> to vector<1x8x128xf32>
    tpu.vector_store %arg4[%c0_8, %c0_9, %c0_10], %19 {strides = array<i32>} : memref<1x8x128xf32, #tpu.memory_space<vmem>>, vector<1x8x128xf32>,
    %c0_11 = arith.constant 0 : index
    %c0_12 = arith.constant 0 : index
    %c0_13 = arith.constant 0 : index
    %20 = vector.load %arg5[%c0_11, %c0_12, %c0_13] : memref<1x8x128xf32, #tpu.memory_space<vmem>>, vector<1x8x128xf32>
    %21 = vector.shape_cast %20 : vector<1x8x128xf32> to vector<8x128xf32>
    %22 = vector.shape_cast %11 : vector<16x128xf32> to vector<2x8x128xf32>
    %cst_14 = arith.constant dense<0.000000e+00> : vector<8x128xf32>
    %23 = vector.multi_reduction <add>, %22, %cst_14 [0] : vector<2x8x128xf32> to vector<8x128xf32>
    %24 = arith.addf %21, %23 : vector<8x128xf32>
    %c0_15 = arith.constant 0 : index
    %c0_16 = arith.constant 0 : index
    %c0_17 = arith.constant 0 : index
    %25 = vector.load %arg5[%c0_15, %c0_16, %c0_17] : memref<1x8x128xf32, #tpu.memory_space<vmem>>, vector<1x8x128xf32>
    %26 = vector.shape_cast %25 : vector<1x8x128xf32> to vector<8x128xf32>
    %27 = vector.shape_cast %24 : vector<8x128xf32> to vector<1x8x128xf32>
    tpu.vector_store %arg5[%c0_15, %c0_16, %c0_17], %27 {strides = array<i32>} : memref<1x8x128xf32, #tpu.memory_space<vmem>>, vector<1x8x128xf32>,
    return
  }
  func.func @transform_0(%arg0: i32, %arg1: i32) -> (i32, i32) {
    %c1_i32 = arith.constant 1 : i32
    %0 = arith.muli %arg0, %c1_i32 : i32
    %1 = arith.addi %0, %arg1 : i32
    %c0_i32 = arith.constant 0 : i32
    %2 = arith.minsi %1, %c0_i32 : i32
    %c0_i32_0 = arith.constant 0 : i32
    %c0_i32_1 = arith.constant 0 : i32
    return %2, %c0_i32_0 : i32, i32
  }
  func.func @transform_1(%arg0: i32, %arg1: i32) -> (i32, i32) {
    %c1_i32 = arith.constant 1 : i32
    %0 = arith.muli %arg0, %c1_i32 : i32
    %1 = arith.addi %0, %arg1 : i32
    %c0_i32 = arith.constant 0 : i32
    %2 = arith.minsi %1, %c0_i32 : i32
    %c0_i32_0 = arith.constant 0 : i32
    %c0_i32_1 = arith.constant 0 : i32
    return %2, %c0_i32_0 : i32, i32
  }
  func.func @transform_2(%arg0: i32, %arg1: i32) -> (i32, i32, i32) {
    %c0_i32 = arith.constant 0 : i32
    %c0_i32_0 = arith.constant 0 : i32
    %c0_i32_1 = arith.constant 0 : i32
    return %arg0, %c0_i32, %c0_i32_0 : i32, i32, i32
  }
  func.func @transform_3(%arg0: i32, %arg1: i32) -> (i32, i32, i32) {
    %c0_i32 = arith.constant 0 : i32
    %c0_i32_0 = arith.constant 0 : i32
    %c0_i32_1 = arith.constant 0 : i32
    return %arg0, %c0_i32, %c0_i32_0 : i32, i32, i32
  }
}

</mosaic_0001>

<llo_original>
// kernel: tpu_custom_call.1
$region0: #{tpu_custom_call.1}
  #allocation0 [shape = 'u32[]', space=smem, size = 0x4, offset = 0x4, fixed_abs, tag = 'smem constant byte address 0x4 - core index']
  #allocation1 [shape = 'u32[144,128]{1,0:T(1,128)}', space=vmem, size = 0x12000, scoped, tag = 'internal scratch']
  %s0 = inlined_call_operand.hbm [shape: f32[16,128], index: 0, kind: input, shape index: {}]
  %s1 = inlined_call_operand.hbm [shape: f32[16,128], index: 1, kind: input, shape index: {}]
  %s2 = inlined_call_operand.hbm [shape: f32[1,8,128], index: 2, kind: output, shape index: {0}]
  %s3 = inlined_call_operand.hbm [shape: f32[1,8,128], index: 3, kind: output, shape index: {1}]
  %4 = xla_tuple %s2, %s3
  %s5 = sld [smem:[#allocation0]]
  $region38: #{tpu_custom_call.1} parent=0
    _
  %s7 = ssub.s32 1, %s5
  %s8 = scalar_select 0, %s7, %s5
  $region1: #{tpu_custom_call.1} parent=0
    #allocation2 [shape = 'u8[8192]{0}', space=vmem, size = 0x2000, scoped, tag = 'input window, operand 0, single buffered']
    #allocation3 [shape = 's32[1]{0}', space=sflag, size = 0x4, scoped, tag = 'scoped memory for tpu_custom_call.1']
    #allocation4 [shape = 's32[1]{0}', space=sflag, size = 0x4, scoped, tag = 'scoped memory for tpu_custom_call.1']
    #allocation5 [shape = 'u8[8192]{0}', space=vmem, size = 0x2000, scoped, tag = 'input window, operand 1, single buffered']
    #allocation6 [shape = 's32[1]{0}', space=sflag, size = 0x4, scoped, tag = 'scoped memory for tpu_custom_call.1']
    #allocation7 [shape = 'u8[4096]{0}', space=vmem, size = 0x1000, scoped, tag = 'output window, operand 0, single buffered']
    #allocation8 [shape = 'u8[4096]{0}', space=vmem, size = 0x1000, scoped, tag = 'output window, operand 1, single buffered']
    #allocation9 [shape = 's32[1]{0}', space=sflag, size = 0x4, scoped, tag = 'scoped memory for tpu_custom_call.1']
    %9 = vsyncpa [#allocation3], 0
    %10 = vsyncpa [#allocation6], 0
    %11 = vsyncpa [#allocation4], 0
    %12 = vsyncpa [#allocation9], 0
    // Predicated region
    $region2: #{tpu_custom_call.1} parent=1 // pred_check
      _
    $region3: #{tpu_custom_call.1} parent=1 // pred_check_branch
      %14 = sbr.rel (0) target = $region5
    $region4: #{tpu_custom_call.1} parent=1 // pred_region
      %s15 = sadd.s32 0, 0
      %p16 = scmp.lt.s32.totalorder %s15, 0
      %s17 = scalar_select %p16, %s15, 0
      %s18 = smul.u32 2, %s17
      %s20 = ssub.s32 256, 256
      %21 = vsyncadd [#allocation3], %s20
      %s22 = smul.addr %s18, 128
      %s23 = scalar_lea.hbm %s0, %s22
      %s24 = sshll.u32 [#allocation2], 4
      %s25 = int_to_ptr.vmem [resolvable:$true] %s24
      %30 = dma.hbm_to_vmem [thread:$0]  %s23, 256, %s25, [#allocation3], 128, 128, 8
    $region5: #{tpu_custom_call.1} parent=1 // pred_fallthru
      _
    // Predicated region
    $region6: #{tpu_custom_call.1} parent=1 // pred_check
      _
    $region7: #{tpu_custom_call.1} parent=1 // pred_check_branch
      %32 = sbr.rel (0) target = $region9
    $region8: #{tpu_custom_call.1} parent=1 // pred_region
      %s33 = sadd.s32 0, 0
      %p34 = scmp.lt.s32.totalorder %s33, 0
      %s35 = scalar_select %p34, %s33, 0
      %s36 = smul.u32 2, %s35
      %s38 = ssub.s32 256, 256
      %39 = vsyncadd [#allocation6], %s38
      %s40 = smul.addr %s36, 128
      %s41 = scalar_lea.hbm %s1, %s40
      %s42 = sshll.u32 [#allocation5], 4
      %s43 = int_to_ptr.vmem [resolvable:$true] %s42
      %48 = dma.hbm_to_vmem [thread:$0]  %s41, 256, %s43, [#allocation6], 128, 128, 8
    $region9: #{tpu_custom_call.1} parent=1 // pred_fallthru
      _
    // Predicated region
    $region10: #{tpu_custom_call.1} parent=1 // pred_check
      _
    $region11: #{tpu_custom_call.1} parent=1 // pred_check_branch
      %50 = sbr.rel (0) target = $region13
    $region12: #{tpu_custom_call.1} parent=1 // pred_region
      %51 = dma.done [#allocation3], 256
    $region13: #{tpu_custom_call.1} parent=1 // pred_fallthru
      _
    // Predicated region
    $region14: #{tpu_custom_call.1} parent=1 // pred_check
      _
    $region15: #{tpu_custom_call.1} parent=1 // pred_check_branch
      %53 = sbr.rel (0) target = $region17
    $region16: #{tpu_custom_call.1} parent=1 // pred_region
      %54 = dma.done [#allocation6], 256
    $region17: #{tpu_custom_call.1} parent=1 // pred_fallthru
      _
    %s55 = sadd.s32 0, 0
    %p56 = scmp.lt.s32.totalorder %s55, 0
    %s57 = scalar_select %p56, %s55, 0
    %s58 = smul.u32 2, %s57
    %s59 = sadd.s32 0, 0
    %p60 = scmp.lt.s32.totalorder %s59, 0
    %s61 = scalar_select %p60, %s59, 0
    %s62 = smul.u32 2, %s61
    %p63 = scmp.eq.s32.totalorder 0, 0
    // Predicated region
    $region18: #{tpu_custom_call.1} parent=1 // pred_check
      %p64 = pneg %p63
    $region19: #{tpu_custom_call.1} parent=1 // pred_check_branch
      %66 = sbr.rel (%p64) target = $region21
    $region20: #{tpu_custom_call.1} parent=1 // pred_region
      %67 = vst [vmem:[#allocation7] sm:$0xff] 0.0
      %68 = vst [vmem:[#allocation8] sm:$0xff] 0.0
    $region21: #{tpu_custom_call.1} parent=1 // pred_fallthru
      _
    %v69 = vld [vmem:[#allocation2] sm:$0xff]
    %v70 = vld [vmem:[#allocation2 + $0x8] sm:$0xff]
    %v71 = vxor.u32 %v69, 2147483648
    %v72 = vxor.u32 %v70, 2147483648
    %v73 = vmul.f32 %v71, 1.442695
    %v74 = vpow.pop %v73
    %v75 = vmul.f32 %v72, 1.442695
    %v76 = vpow.pop %v75
    %v77 = vadd.f32 %v74, 1.0
    %v78 = vadd.f32 %v76, 1.0
    %v79 = vrcp.pop %v77
    %v80 = vmul.f32 1.0, %v79
    %v81 = vrcp.pop %v78
    %v82 = vmul.f32 1.0, %v81
    %v83 = vld [vmem:[#allocation5] sm:$0xff]
    %v84 = vld [vmem:[#allocation5 + $0x8] sm:$0xff]
    %v85 = vmul.f32 %v80, %v83
    %v86 = vmul.f32 %v82, %v84
    %v87 = vadd.f32 %v80, %v83
    %v88 = vadd.f32 %v82, %v84
    %v89 = vld [vmem:[#allocation7] sm:$0xff]
    %v90 = vadd.f32 %v85, %v86
    %v91 = vadd.f32 %v89, %v90
    %92 = vst [vmem:[#allocation7] sm:$0xff] %v91
    %v93 = vld [vmem:[#allocation8] sm:$0xff]
    %v94 = vadd.f32 %v87, %v88
    %v95 = vadd.f32 %v93, %v94
    %96 = vst [vmem:[#allocation8] sm:$0xff] %v95
    // Predicated region
    $region22: #{tpu_custom_call.1} parent=1 // pred_check
      _
    $region23: #{tpu_custom_call.1} parent=1 // pred_check_branch
      %98 = sbr.rel (0) target = $region25
    $region24: #{tpu_custom_call.1} parent=1 // pred_region
      %s100 = ssub.s32 128, 128
      %101 = vsyncadd [#allocation4], %s100
      %s103 = sshll.u32 [#allocation7], 4
      %s104 = int_to_ptr.vmem [resolvable:$true] %s103
      %106 = dma.vmem_to_hbm [thread:$0]  %s104, 128, %s2, [#allocation4]
    $region25: #{tpu_custom_call.1} parent=1 // pred_fallthru
      _
    // Predicated region
    $region26: #{tpu_custom_call.1} parent=1 // pred_check
      _
    $region27: #{tpu_custom_call.1} parent=1 // pred_check_branch
      %108 = sbr.rel (0) target = $region29
    $region28: #{tpu_custom_call.1} parent=1 // pred_region
      %s110 = ssub.s32 128, 128
      %111 = vsyncadd [#allocation9], %s110
      %s113 = sshll.u32 [#allocation8], 4
      %s114 = int_to_ptr.vmem [resolvable:$true] %s113
      %116 = dma.vmem_to_hbm [thread:$0]  %s114, 128, %s3, [#allocation9]
    $region29: #{tpu_custom_call.1} parent=1 // pred_fallthru
      _
    // Predicated region
    $region30: #{tpu_custom_call.1} parent=1 // pred_check
      _
    $region31: #{tpu_custom_call.1} parent=1 // pred_check_branch
      %118 = sbr.rel (0) target = $region33
    $region32: #{tpu_custom_call.1} parent=1 // pred_region
      %119 = dma.done [#allocation4], 128
    $region33: #{tpu_custom_call.1} parent=1 // pred_fallthru
      _
    // Predicated region
    $region34: #{tpu_custom_call.1} parent=1 // pred_check
      _
    $region35: #{tpu_custom_call.1} parent=1 // pred_check_branch
      %121 = sbr.rel (0) target = $region37
    $region36: #{tpu_custom_call.1} parent=1 // pred_region
      %122 = dma.done [#allocation9], 128
    $region37: #{tpu_custom_call.1} parent=1 // pred_fallthru
      _
    %123 = vsyncpa [#allocation3], 1
    %124 = vsyncpa [#allocation6], 1
    %125 = vsyncpa [#allocation4], 1
    %126 = vsyncpa [#allocation9], 1

</llo_original>
